<compile_context>
chip_gen: v5e
topology: v5e:2x2
jax: 0.10.0
libtpu: 0.0.40
codegen_flags: <defaults>
</compile_context>

<pallas_src>
import jax
import jax.numpy as jnp
from jax import lax
from jax.experimental import pallas as pl
from jax.experimental.pallas import tpu as pltpu


# -----------------------------------------------------------------------------
# Tiling / VMEM helpers
# -----------------------------------------------------------------------------
def _divisors(n: int):
    return [d for d in range(1, n + 1) if n % d == 0]


def _vmem_capacity_bytes() -> int:
    """Physical VMEM of the current chip; conservative fallback (v7x, 64 MiB)."""
    try:
        info = pltpu.get_tpu_info()
        cap = int(getattr(info, "vmem_capacity_bytes", 0))
        if cap > 0:
            return cap
    except Exception:
        pass
    return 64 * 1024 * 1024


def _vmem_limit_bytes(needed: int) -> int:
    """Explicit scoped-VMEM limit: generous headroom, capped at 3/4 of physical."""
    cap = _vmem_capacity_bytes()
    limit = max(2 * needed, 32 << 20)
    limit = min(limit, cap * 3 // 4)
    assert limit >= needed, (
        f"requested tiling needs {needed} B VMEM but only {limit} B available")
    return int(limit)


def _pick_col_tiling(world, out_shard, in_features, w_bytes, target_bytes=4 << 20):
    """(shards_per_step, block_k) for the column-parallel path.

    Constraints: spp | world, tk | in_features, lane-legal tiles
    (spp*out_shard and tk multiples of 128, or equal to the full dim),
    weight tile <= target_bytes, and — when achievable — world//spp >= 2 so the
    'parallel' grid axis keeps both TensorCores busy on v7x."""
    full_n = world * out_shard
    tk_cands = [d for d in _divisors(in_features) if d % 128 == 0] or [in_features]
    spp_cands = [d for d in _divisors(world)
                 if (d * out_shard) % 128 == 0 or d * out_shard == full_n] or [world]
    can_multicore = (world // min(spp_cands)) >= 2
    best = None
    for require_multicore in ((True, False) if can_multicore else (False,)):
        for spp in spp_cands:
            if require_multicore and world // spp < 2:
                continue
            for tk in tk_cands:
                wbytes = spp * out_shard * tk * w_bytes
                if wbytes > target_bytes:
                    continue
                if best is None or wbytes > best[0]:
                    best = (wbytes, spp, tk)
        if best is not None:
            break
    if best is None:  # even the smallest legal tile exceeds the target: take it
        return min(spp_cands), min(tk_cands)
    return best[1], best[2]


def _pick_row_tiling(out_features, in_shard, w_bytes, target_bytes=4 << 20):
    """(block_n, block_k) for the row-parallel path (same rules as above)."""
    tn_cands = [d for d in _divisors(out_features) if d % 128 == 0] or [out_features]
    tk_cands = [d for d in _divisors(in_shard) if d % 128 == 0] or [in_shard]
    can_multicore = (out_features // min(tn_cands)) >= 2
    best = None
    for require_multicore in ((True, False) if can_multicore else (False,)):
        for tn in tn_cands:
            if require_multicore and out_features // tn < 2:
                continue
            for tk in tk_cands:
                wbytes = tn * tk * w_bytes
                if wbytes > target_bytes:
                    continue
                if best is None or wbytes > best[0]:
                    best = (wbytes, tn, tk)
        if best is not None:
            break
    if best is None:
        return min(tn_cands), min(tk_cands)
    return best[1], best[2]


# -----------------------------------------------------------------------------
# Kernel 1: default path (row_partition=False, cat_output=True)
#   grid = (W // spp [parallel], IN // tk [arbitrary reduction])
#   Each j-step computes the output columns of a group of shards; K is tiled
#   and accumulated in an f32 VMEM scratch; store happens once per j at last k.
# -----------------------------------------------------------------------------
def _col_parallel_kernel(x_ref, w_ref, b_ref, o_ref, acc_ref):
    k = pl.program_id(1)

    @pl.when(k == 0)
    def _():
        acc_ref[...] = jnp.zeros_like(acc_ref)

    # x: (B, tk), w: (n_tile, tk) -> contract last dims; MXU-direct, no transpose.
    acc_ref[...] += lax.dot_general(
        x_ref[...], w_ref[...],
        dimension_numbers=(((1,), (1,)), ((), ())),
        preferred_element_type=jnp.float32)

    @pl.when(k == pl.num_programs(1) - 1)
    def _():
        o_ref[...] = (acc_ref[...] + b_ref[...].astype(jnp.float32)).astype(o_ref.dtype)


def flyweight_forward_cat(x, w_shards, b_shards, *, shards_per_step=None,
                          block_k=None, weight_buffers=None):
    """x: (B, IN); w_shards: (W, OUT_S, IN); b_shards: (W, OUT_S).
    Returns (B, W * OUT_S) — concat of per-shard Linear outputs along dim -1."""
    W, OUT_S, IN = w_shards.shape
    B = x.shape[0]
    assert x.shape[1] == IN
    wb = jnp.dtype(w_shards.dtype).itemsize
    xb = jnp.dtype(x.dtype).itemsize

    spp_auto, tk_auto = _pick_col_tiling(W, OUT_S, IN, wb)
    spp = spp_auto if shards_per_step is None else shards_per_step
    tk = tk_auto if block_k is None else block_k
    assert W % spp == 0 and IN % tk == 0
    n_tile = spp * OUT_S
    assert tk % 128 == 0 or tk == IN, "block_k must be a multiple of 128 or == IN"
    assert n_tile % 128 == 0 or n_tile == W * OUT_S, \
        "shards_per_step * OUT_S must be a multiple of 128 or cover the full output"
    nk = IN // tk

    # Flatten shards once in the wrapper: (W, OUT_S, IN) -> (W*OUT_S, IN) is a
    # free row-major reshape; the kernel then needs no transpose at all.
    w_flat = w_shards.reshape(W * OUT_S, IN)
    b_flat = b_shards.reshape(1, W * OUT_S)

    # VMEM budget (double-buffered pipeline blocks + f32 accumulator).
    wbufs = 2 if weight_buffers is None else weight_buffers
    vmem_needed = (wbufs * n_tile * tk * wb       # weight tiles (dominant stream)
                   + 2 * B * tk * xb              # x K-slab
                   + 2 * B * n_tile * xb          # output tile
                   + 2 * n_tile * wb              # bias tile
                   + B * n_tile * 4)              # f32 accumulator
    vmem_limit = _vmem_limit_bytes(vmem_needed)

    w_spec_kwargs = {}
    if weight_buffers is not None:
        w_spec_kwargs["pipeline_mode"] = pl.Buffered(weight_buffers)

    cost = pl.CostEstimate(
        flops=2 * B * IN * W * OUT_S,
        transcendentals=0,
        bytes_accessed=(W * OUT_S * IN * wb + B * IN * xb
                        + B * W * OUT_S * xb + W * OUT_S * wb))

    return pl.pallas_call(
        _col_parallel_kernel,
        out_shape=jax.ShapeDtypeStruct((B, W * OUT_S), x.dtype),
        grid_spec=pltpu.PrefetchScalarGridSpec(
            num_scalar_prefetch=0,
            grid=(W // spp, nk),
            in_specs=[
                pl.BlockSpec((B, tk), lambda j, k: (0, k)),          # x K-slab
                pl.BlockSpec((n_tile, tk), lambda j, k: (j, k),
                             **w_spec_kwargs),                       # shard-group weights
                pl.BlockSpec((1, n_tile), lambda j, k: (0, j)),      # shard-group bias
            ],
            out_specs=pl.BlockSpec((B, n_tile), lambda j, k: (0, j)),
            scratch_shapes=[pltpu.VMEM((B, n_tile), jnp.float32)],   # f32 accumulator
        ),
        compiler_params=pltpu.CompilerParams(
            dimension_semantics=("parallel", "arbitrary"),
            vmem_limit_bytes=vmem_limit),
        cost_estimate=cost,
    )(x, w_flat, b_flat)


# -----------------------------------------------------------------------------
# Kernel 2: row_partition=True path
#   grid = (OUT // tn [parallel over output-column tiles], W * nk [arbitrary])
#   The (shard, K) reduction is collapsed into one axis; each OUT tile has its
#   own f32 accumulator lifecycle (reset at t==0, store+bias at t==last).
# -----------------------------------------------------------------------------
def _row_parallel_kernel(x_ref, w_ref, b_ref, o_ref, acc_ref):
    t = pl.program_id(1)

    @pl.when(t == 0)
    def _():
        acc_ref[...] = jnp.zeros_like(acc_ref)

    # x chunk K-slab: (B, tk), w shard slab: (tn, tk) -> contract last dims.
    acc_ref[...] += lax.dot_general(
        x_ref[...], w_ref[...],
        dimension_numbers=(((1,), (1,)), ((), ())),
        preferred_element_type=jnp.float32)

    @pl.when(t == pl.num_programs(1) - 1)
    def _():
        o_ref[...] = (acc_ref[...] + b_ref[...].astype(jnp.float32)).astype(o_ref.dtype)


def flyweight_forward_row(x, w_shards, b_shards, *, block_n=None, block_k=None,
                          weight_buffers=None):
    """x: (B, W * IN_S); w_shards: (W, OUT, IN_S); b_shards: (W, OUT).
    Returns (B, OUT) — sum over shards of Linear(x_chunk_j; shard_j) (per-shard
    biases summed, matching the reference forward)."""
    W, OUT, IN_S = w_shards.shape
    B = x.shape[0]
    assert x.shape[1] == W * IN_S
    wb = jnp.dtype(w_shards.dtype).itemsize
    xb = jnp.dtype(x.dtype).itemsize

    tn_auto, tk_auto = _pick_row_tiling(OUT, IN_S, wb)
    tn = tn_auto if block_n is None else block_n
    tk = tk_auto if block_k is None else block_k
    assert OUT % tn == 0 and IN_S % tk == 0
    assert tn % 128 == 0 or tn == OUT, "block_n must be a multiple of 128 or == OUT"
    assert tk % 128 == 0 or tk == IN_S, "block_k must be a multiple of 128 or == IN_S"
    nk = IN_S // tk
    nt = W * nk                      # collapsed (shard, K) reduction length

    # Per-shard biases are summed by the reference; pre-sum once (kept in f32).
    b_sum = b_shards.astype(jnp.float32).sum(axis=0, keepdims=True)   # (1, OUT)

    wbufs = 2 if weight_buffers is None else weight_buffers
    vmem_needed = (wbufs * tn * tk * wb
                   + 2 * B * tk * xb
                   + 2 * B * tn * xb
                   + 2 * tn * 4
                   + B * tn * 4)
    vmem_limit = _vmem_limit_bytes(vmem_needed)

    w_spec_kwargs = {}
    if weight_buffers is not None:
        w_spec_kwargs["pipeline_mode"] = pl.Buffered(weight_buffers)

    cost = pl.CostEstimate(
        flops=2 * B * (W * IN_S) * OUT,
        transcendentals=0,
        bytes_accessed=(W * OUT * IN_S * wb + B * W * IN_S * xb
                        + B * OUT * xb + OUT * 4))

    return pl.pallas_call(
        _row_parallel_kernel,
        out_shape=jax.ShapeDtypeStruct((B, OUT), x.dtype),
        grid_spec=pltpu.PrefetchScalarGridSpec(
            num_scalar_prefetch=0,
            grid=(OUT // tn, nt),
            in_specs=[
                # x chunk j, K-slab k: element offset (j*nk + k)*tk == t*tk.
                pl.BlockSpec((B, tk), lambda n, t: (0, t)),
                # shard dim squeezed out -> kernel sees a clean (tn, tk) slab.
                pl.BlockSpec((pl.Squeezed(), tn, tk),
                             lambda n, t: (t // nk, n, t % nk),
                             **w_spec_kwargs),
                pl.BlockSpec((1, tn), lambda n, t: (0, n)),           # summed bias tile
            ],
            out_specs=pl.BlockSpec((B, tn), lambda n, t: (0, n)),
            scratch_shapes=[pltpu.VMEM((B, tn), jnp.float32)],        # f32 accumulator
        ),
        compiler_params=pltpu.CompilerParams(
            dimension_semantics=("parallel", "arbitrary"),
            vmem_limit_bytes=vmem_limit),
        cost_estimate=cost,
    )(x, w_shards, b_sum)


# TODO(synk): the actual P2P weight rotation (isend/irecv ring of flat_param and
# the backward-pass grad rotation) is a multi-device collective; on a single
# device it is the identity over the set of shards, which the kernels compute.


if __name__ == "__main__":
    key = jax.random.PRNGKey(0)
    k1, k2, k3, k4, k5 = jax.random.split(key, 5)

    WORLD = 2      # emulated world_size of the FlyweightWarpper group
    B = 8          # batch rows
    IN = 256       # in_features of the wrapped nn.Linear
    OUT_S = 128    # out_features held by each rank (column-parallel shard)

    dtype = jnp.bfloat16   # stream weights/activations in bf16, accumulate in f32

    # --- default path: column-parallel concat (row_partition=False, cat_output=True)
    x = jax.random.normal(k1, (B, IN), dtype=jnp.float32).astype(dtype)
    w_col = (jax.random.normal(k2, (WORLD, OUT_S, IN), dtype=jnp.float32) * 0.02).astype(dtype)
    b_col = (jax.random.normal(k3, (WORLD, OUT_S), dtype=jnp.float32) * 0.02).astype(dtype)

    xf = x.astype(jnp.float32)
    ref_cat = jnp.concatenate(
        [xf @ w_col[j].astype(jnp.float32).T + b_col[j].astype(jnp.float32)[None, :]
         for j in range(WORLD)], axis=-1)

    # auto (VMEM-aware) tiling
    out_cat = jax.block_until_ready(flyweight_forward_cat(x, w_col, b_col))
    assert out_cat.shape == (B, WORLD * OUT_S)
    assert out_cat.dtype == dtype
    assert jnp.allclose(out_cat.astype(jnp.float32), ref_cat, atol=2e-2, rtol=2e-2)

    # explicit K tiling path (exercises the reduction axis)
    out_cat_k = jax.block_until_ready(
        flyweight_forward_cat(x, w_col, b_col, block_k=128))
    assert jnp.allclose(out_cat_k.astype(jnp.float32), ref_cat, atol=2e-2, rtol=2e-2)

    # --- row_partition=True path: input split along -1, shard outputs summed
    OUT = 256
    IN_S = IN // WORLD
    w_row = (jax.random.normal(k4, (WORLD, OUT, IN_S), dtype=jnp.float32) * 0.02).astype(dtype)
    b_row = (jax.random.normal(k5, (WORLD, OUT), dtype=jnp.float32) * 0.02).astype(dtype)

    out_row = jax.block_until_ready(flyweight_forward_row(x, w_row, b_row))

    ref_row = sum(
        xf[:, j * IN_S:(j + 1) * IN_S] @ w_row[j].astype(jnp.float32).T
        + b_row[j].astype(jnp.float32)[None, :]
        for j in range(WORLD))
    assert out_row.shape == (B, OUT)
    assert out_row.dtype == dtype
    assert jnp.allclose(out_row.astype(jnp.float32), ref_row, atol=2e-2, rtol=2e-2)

    print("KERNEL_OK")
</pallas_src>

<mosaic_0001>
module attributes {stable_mosaic.version = 11 : i64} {
  func.func @_col_parallel_kernel(%arg0: i32, %arg1: i32, %arg2: memref<8x256xbf16, #tpu.memory_space<vmem>>, %arg3: memref<128x256xbf16, #tpu.memory_space<vmem>>, %arg4: memref<1x128xbf16, #tpu.memory_space<vmem>>, %arg5: memref<8x128xbf16, #tpu.memory_space<vmem>>, %arg6: memref<8x128xf32, #tpu.memory_space<vmem>>) attributes {dimension_semantics = [#tpu.dimension_semantics<parallel>, #tpu.dimension_semantics<arbitrary>], iteration_bounds = array<i64: 2, 1>, scalar_prefetch = 0 : i64, scratch_operands = 1 : i64, tpu.core_type = #tpu.core_type<tc>, window_params = [{transform_indices = @transform_0, window_bounds = array<i64: 8, 256>}, {transform_indices = @transform_1, window_bounds = array<i64: 128, 256>}, {transform_indices = @transform_2, window_bounds = array<i64: 1, 128>}, {transform_indices = @transform_3, window_bounds = array<i64: 8, 128>}]} {
    %c0_i32 = arith.constant 0 : i32
    %0 = arith.cmpi eq, %arg1, %c0_i32 : i32
    %1 = arith.extui %0 : i1 to i32
    %c0_i32_0 = arith.constant 0 : i32
    %2 = arith.cmpi ne, %1, %c0_i32_0 : i32
    scf.if %2 {
      %cst_10 = arith.constant 0.000000e+00 : f32
      %12 = vector.broadcast %cst_10 : f32 to vector<8x128xf32>
      %c0_11 = arith.constant 0 : index
      %c0_12 = arith.constant 0 : index
      %13 = vector.load %arg6[%c0_11, %c0_12] : memref<8x128xf32, #tpu.memory_space<vmem>>, vector<8x128xf32>
      tpu.vector_store %arg6[%c0_11, %c0_12], %12 {strides = array<i32>} : memref<8x128xf32, #tpu.memory_space<vmem>>, vector<8x128xf32>,
    } else {
    }
    %c0 = arith.constant 0 : index
    %c0_1 = arith.constant 0 : index
    %3 = vector.load %arg6[%c0, %c0_1] : memref<8x128xf32, #tpu.memory_space<vmem>>, vector<8x128xf32>
    %c0_2 = arith.constant 0 : index
    %c0_3 = arith.constant 0 : index
    %4 = vector.load %arg2[%c0_2, %c0_3] : memref<8x256xbf16, #tpu.memory_space<vmem>>, vector<8x256xbf16>
    %c0_4 = arith.constant 0 : index
    %c0_5 = arith.constant 0 : index
    %5 = vector.load %arg3[%c0_4, %c0_5] : memref<128x256xbf16, #tpu.memory_space<vmem>>, vector<128x256xbf16>
    %cst = arith.constant dense<0.000000e+00> : vector<8x128xf32>
    %6 = tpu.matmul %4, %5, %cst {dimension_numbers = #tpu.dot_dimension_numbers<[1], [1], [0], [0], [0, 0, 1, 0], [], []>} : vector<8x256xbf16>, vector<128x256xbf16>, vector<8x128xf32> -> vector<8x128xf32>
    %7 = arith.addf %3, %6 : vector<8x128xf32>
    %c0_6 = arith.constant 0 : index
    %c0_7 = arith.constant 0 : index
    %8 = vector.load %arg6[%c0_6, %c0_7] : memref<8x128xf32, #tpu.memory_space<vmem>>, vector<8x128xf32>
    tpu.vector_store %arg6[%c0_6, %c0_7], %7 {strides = array<i32>} : memref<8x128xf32, #tpu.memory_space<vmem>>, vector<8x128xf32>,
    %c0_i32_8 = arith.constant 0 : i32
    %9 = arith.cmpi eq, %arg1, %c0_i32_8 : i32
    %10 = arith.extui %9 : i1 to i32
    %c0_i32_9 = arith.constant 0 : i32
    %11 = arith.cmpi ne, %10, %c0_i32_9 : i32
    scf.if %11 {
      %c0_10 = arith.constant 0 : index
      %c0_11 = arith.constant 0 : index
      %12 = vector.load %arg6[%c0_10, %c0_11] : memref<8x128xf32, #tpu.memory_space<vmem>>, vector<8x128xf32>
      %c0_12 = arith.constant 0 : index
      %c0_13 = arith.constant 0 : index
      %13 = vector.load %arg4[%c0_12, %c0_13] : memref<1x128xbf16, #tpu.memory_space<vmem>>, vector<1x128xbf16>
      %14 = arith.extf %13 : vector<1x128xbf16> to vector<1x128xf32>
      %15 = vector.broadcast %14 : vector<1x128xf32> to vector<8x128xf32>
      %16 = arith.addf %12, %15 : vector<8x128xf32>
      %17 = arith.truncf %16 : vector<8x128xf32> to vector<8x128xbf16>
      %c0_14 = arith.constant 0 : index
      %c0_15 = arith.constant 0 : index
      %18 = vector.load %arg5[%c0_14, %c0_15] : memref<8x128xbf16, #tpu.memory_space<vmem>>, vector<8x128xbf16>
      tpu.vector_store %arg5[%c0_14, %c0_15], %17 {strides = array<i32>} : memref<8x128xbf16, #tpu.memory_space<vmem>>, vector<8x128xbf16>,
    } else {
    }
    return
  }
  func.func @transform_0(%arg0: i32, %arg1: i32) -> (i32, i32) {
    %c0_i32 = arith.constant 0 : i32
    %c0_i32_0 = arith.constant 0 : i32
    return %c0_i32, %arg1 : i32, i32
  }
  func.func @transform_1(%arg0: i32, %arg1: i32) -> (i32, i32) {
    %c0_i32 = arith.constant 0 : i32
    return %arg0, %arg1 : i32, i32
  }
  func.func @transform_2(%arg0: i32, %arg1: i32) -> (i32, i32) {
    %c0_i32 = arith.constant 0 : i32
    %c0_i32_0 = arith.constant 0 : i32
    return %c0_i32, %arg0 : i32, i32
  }
  func.func @transform_3(%arg0: i32, %arg1: i32) -> (i32, i32) {
    %c0_i32 = arith.constant 0 : i32
    %c0_i32_0 = arith.constant 0 : i32
    return %c0_i32, %arg0 : i32, i32
  }
}

</mosaic_0001>

<llo_original>
// kernel: tpu_custom_call.1
$region0: #{tpu_custom_call.1}
  #allocation0 [shape = 'u32[]', space=smem, size = 0x4, offset = 0x4, fixed_abs, tag = 'smem constant byte address 0x4 - core index']
  #allocation1 [shape = 'u32[72,128]{1,0:T(1,128)}', space=vmem, size = 0x9000, scoped, tag = 'internal scratch']
  #allocation2 [shape = 'f32[8,128]{1,0:T(8,128)}', space=vmem, size = 0x1000, scoped, tag = 'scratch operand']
  %s0 = inlined_call_operand.hbm [shape: bf16[8,256], index: 0, kind: input, shape index: {}]
  %s1 = inlined_call_operand.hbm [shape: bf16[256,256], index: 1, kind: input, shape index: {}]
  %s2 = inlined_call_operand.hbm [shape: bf16[1,256], index: 2, kind: input, shape index: {}]
  %s3 = inlined_call_operand.hbm [shape: bf16[8,256], index: 3, kind: output, shape index: {}]
  %s4 = sld [smem:[#allocation0]]
  $region65: #{tpu_custom_call.1} parent=0
    _
  %s6 = ssub.s32 1, %s4
  %s7 = scalar_select 0, %s6, %s4
  $region1: #{tpu_custom_call.1} parent=0
    #allocation3 [shape = 'u8[4096]{0}', space=vmem, size = 0x1000, scoped, tag = 'input window, operand 0, single buffered']
    #allocation4 [shape = 's32[2]{0}', space=sflag, size = 0x8, scoped, tag = 'scoped memory for tpu_custom_call.1']
    #allocation5 [shape = 's32[2]{0}', space=sflag, size = 0x8, scoped, tag = 'scoped memory for tpu_custom_call.1']
    #allocation6 [shape = 'u8[131072]{0}', space=vmem, size = 0x20000, scoped, tag = 'input window, operand 1']
    #allocation7 [shape = 's32[2]{0}', space=sflag, size = 0x8, scoped, tag = 'scoped memory for tpu_custom_call.1']
    #allocation8 [shape = 'u8[1024]{0}', space=vmem, size = 0x400, scoped, tag = 'input window, operand 2']
    #allocation9 [shape = 'u8[4096]{0}', space=vmem, size = 0x1000, scoped, tag = 'output window, operand 0']
    %8 = vsyncpa [#allocation4], 0
    %9 = vsyncpa [#allocation7], 0
    %s10 = scalar_lea.sflag [#allocation7], 1
    %11 = vsyncpa %s10, 0
    %12 = vsyncpa [#allocation5], 0
    %s13 = scalar_lea.sflag [#allocation5], 1
    %14 = vsyncpa %s13, 0
    loop: start=0, step=1, limit=4
    $region2: #{tpu_custom_call.1} parent=1 // loop_pre_header
      _
    $region3: #{tpu_custom_call.1} parent=1 // loop_header
      %s16 = sphi 0, %s20
      %p17 = scmp.ge.s32.totalorder %s16, 4
      %s23 = sphi 0, %s35
      %s24 = sphi 0, %s31
      %s25 = sphi 0, %s23
      %s26 = sphi 0, %s24
      %s27 = sphi 0, %s25
      %s28 = sphi 0, %s26
      %s38 = sphi 0, %s40
      %s41 = sphi 0, %s38
      %s42 = sphi 0, %s41
      %s58 = sphi 0, %s42
      %s66 = sphi 0, %s68
      %s69 = sphi 0, %s66
      %s70 = sphi 0, %s69
      %s86 = sphi 0, %s70
      %s92 = sphi 0, %s94
      %s95 = sphi 0, %s92
      %s96 = sphi 0, %s95
      %s112 = sphi 0, %s96
      %s118 = sphi 0, %s120
      %s121 = sphi 0, %s118
      %s122 = sphi 0, %s121
      %s138 = sphi 0, %s122
    $region4: #{tpu_custom_call.1} parent=1 // loop_header_branch
      %19 = sbr.rel (%p17) target = $region8
    $region5: #{tpu_custom_call.1} parent=1 // loop_body
      %s21 = ssub.s32 %s16, 1
      %s22 = ssub.s32 %s16, 2
      %s29 = sadd.s32 1, %s24
      %p30 = scmp.ge.s32.totalorder %s29, 1
      %s31 = scalar_select %p30, 0, %s29
      %s32 = sadd.s32 1, %s23
      %s33 = scalar_select %p30, %s32, %s23
      %p34 = scmp.ge.s32.totalorder %s33, 2
      %s35 = scalar_select %p34, 0, %s33
      %s36 = ssub.s32 %s24, %s31
      %p37 = scmp.eq.s32.totalorder %s36, 0
      %s39 = sadd.s32 %s38, 1
      %s40 = scalar_select %p37, %s38, %s39
      %p43 = pneg %p37
      %p44 = scmp.eq.s32.totalorder %s16, 1
      %p45 = por %p43, %p44
      %p46 = scmp.ne.s32.totalorder %s38, %s41
      %p47 = scmp.eq.s32.totalorder %s16, 0
      %p48 = por %p46, %p47
      %p49 = scmp.ne.s32.totalorder %s38, %s41
      %p50 = scmp.eq.s32.totalorder %s21, 1
      %p51 = por %p49, %p50
      %p52 = scmp.ne.s32.totalorder %s41, %s42
      %p53 = scmp.eq.s32.totalorder %s21, 0
      %p54 = por %p52, %p53
      %p55 = scmp.ne.s32.totalorder %s41, %s42
      %p56 = scmp.eq.s32.totalorder %s22, 1
      %p57 = por %p55, %p56
      %p59 = scmp.ne.s32.totalorder %s42, %s58
      %p60 = scmp.eq.s32.totalorder %s22, 0
      %p61 = por %p59, %p60
      %s62 = ssub.s32 %s23, %s35
      %s63 = ssub.s32 %s24, %s31
      %s64 = sor.u32 %s62, %s63
      %p65 = scmp.eq.s32.totalorder %s64, 0
      %s67 = sadd.s32 %s66, 1
      %s68 = scalar_select %p65, %s66, %s67
      %p71 = pneg %p65
      %p72 = scmp.eq.s32.totalorder %s16, 1
      %p73 = por %p71, %p72
      %p74 = scmp.ne.s32.totalorder %s66, %s69
      %p75 = scmp.eq.s32.totalorder %s16, 0
      %p76 = por %p74, %p75
      %p77 = scmp.ne.s32.totalorder %s66, %s69
      %p78 = scmp.eq.s32.totalorder %s21, 1
      %p79 = por %p77, %p78
      %p80 = scmp.ne.s32.totalorder %s69, %s70
      %p81 = scmp.eq.s32.totalorder %s21, 0
      %p82 = por %p80, %p81
      %p83 = scmp.ne.s32.totalorder %s69, %s70
      %p84 = scmp.eq.s32.totalorder %s22, 1
      %p85 = por %p83, %p84
      %p87 = scmp.ne.s32.totalorder %s70, %s86
      %p88 = scmp.eq.s32.totalorder %s22, 0
      %p89 = por %p87, %p88
      %s90 = ssub.s32 %s23, %s35
      %p91 = scmp.eq.s32.totalorder %s90, 0
      %s93 = sadd.s32 %s92, 1
      %s94 = scalar_select %p91, %s92, %s93
      %p97 = pneg %p91
      %p98 = scmp.eq.s32.totalorder %s16, 1
      %p99 = por %p97, %p98
      %p100 = scmp.ne.s32.totalorder %s92, %s95
      %p101 = scmp.eq.s32.totalorder %s16, 0
      %p102 = por %p100, %p101
      %p103 = scmp.ne.s32.totalorder %s92, %s95
      %p104 = scmp.eq.s32.totalorder %s21, 1
      %p105 = por %p103, %p104
      %p106 = scmp.ne.s32.totalorder %s95, %s96
      %p107 = scmp.eq.s32.totalorder %s21, 0
      %p108 = por %p106, %p107
      %p109 = scmp.ne.s32.totalorder %s95, %s96
      %p110 = scmp.eq.s32.totalorder %s22, 1
      %p111 = por %p109, %p110
      %p113 = scmp.ne.s32.totalorder %s96, %s112
      %p114 = scmp.eq.s32.totalorder %s22, 0
      %p115 = por %p113, %p114
      %s116 = ssub.s32 %s23, %s35
      %p117 = scmp.eq.s32.totalorder %s116, 0
      %s119 = sadd.s32 %s118, 1
      %s120 = scalar_select %p117, %s118, %s119
      %p123 = pneg %p117
      %p124 = scmp.eq.s32.totalorder %s16, 1
      %p125 = por %p123, %p124
      %p126 = scmp.ne.s32.totalorder %s118, %s121
      %p127 = scmp.eq.s32.totalorder %s16, 0
      %p128 = por %p126, %p127
      %p129 = scmp.ne.s32.totalorder %s118, %s121
      %p130 = scmp.eq.s32.totalorder %s21, 1
      %p131 = por %p129, %p130
      %p132 = scmp.ne.s32.totalorder %s121, %s122
      %p133 = scmp.eq.s32.totalorder %s21, 0
      %p134 = por %p132, %p133
      %p135 = scmp.ne.s32.totalorder %s121, %s122
      %p136 = scmp.eq.s32.totalorder %s22, 1
      %p137 = por %p135, %p136
      %p139 = scmp.ne.s32.totalorder %s122, %s138
      %p140 = scmp.eq.s32.totalorder %s22, 0
      %p141 = por %p139, %p140
      %p142 = scmp.le.s32.totalorder 1, %s16
      %p143 = scmp.lt.s32.totalorder %s16, 3
      %p144 = pnand %p142, %p143
      %p145 = pneg %p144
      // Predicated region
      $region9: #{tpu_custom_call.1} parent=5 // pred_check
        _
      $region10: #{tpu_custom_call.1} parent=5 // pred_check_branch
        %147 = sbr.rel (%p144) target = $region12
      $region11: #{tpu_custom_call.1} parent=5 // pred_region
        %s148 = ssub.s32 %s16, 1
        // Predicated region
        $region13: #{tpu_custom_call.1} parent=11 // pred_check
          %p149 = pneg %p54
        $region14: #{tpu_custom_call.1} parent=11 // pred_check_branch
          %151 = sbr.rel (%p149) target = $region16
        $region15: #{tpu_custom_call.1} parent=11 // pred_region
          %s152 = smul.u32 2, %s26
          %154 = vsyncadd [#allocation4], 0
          %s155 = smul.addr %s152, 4
          %s156 = scalar_lea.hbm %s0, %s155
          %s158 = sshll.u32 %s156, 4
          %s159 = int_to_ptr.hbm [resolvable:$true] %s158
          %s160 = sshll.u32 [#allocation3], 4
          %s161 = int_to_ptr.vmem [resolvable:$true] %s160
          %163 = dma.hbm_to_vmem [thread:$0]  %s159, 128, %s161, [#allocation4]
        $region16: #{tpu_custom_call.1} parent=11 // pred_fallthru
          _
      $region12: #{tpu_custom_call.1} parent=5 // pred_fallthru
        _
      %p164 = scmp.lt.s32.totalorder %s16, 2
      // Predicated region
      $region17: #{tpu_custom_call.1} parent=5 // pred_check
        %p165 = pneg %p164
      $region18: #{tpu_custom_call.1} parent=5 // pred_check_branch
        %167 = sbr.rel (%p165) target = $region20
      $region19: #{tpu_custom_call.1} parent=5 // pred_region
        // Predicated region
        $region21: #{tpu_custom_call.1} parent=19 // pred_check
          %p168 = pneg %p76
        $region22: #{tpu_custom_call.1} parent=19 // pred_check_branch
          %170 = sbr.rel (%p168) target = $region24
        $region23: #{tpu_custom_call.1} parent=19 // pred_region
          %s171 = sand.u32 %s16, 1
          %s172 = scalar_lea.sflag [#allocation7], %s171
          %s173 = sand.u32 %s66, 1
          %s174 = smul.addr %s173, 128
          %s175 = scalar_lea.vmem [#allocation6], %s174
          %s176 = smul.u32 16, %s23
          %s177 = smul.u32 2, %s24
          %179 = vsyncadd %s172, 0
          %s180 = smul.addr %s176, 2
          %s181 = sadd.s32 %s177, %s180
          %s182 = smul.addr %s181, 4
          %s183 = scalar_lea.hbm %s1, %s182
          %s184 = sshll.u32 %s183, 4
          %s185 = int_to_ptr.hbm [resolvable:$true] %s184
          %s186 = sshll.u32 %s175, 4
          %s187 = int_to_ptr.vmem [resolvable:$true] %s186
          %192 = dma.hbm_to_vmem [thread:$0]  %s185, 2048, %s187, %s172, 128, 128, 8
        $region24: #{tpu_custom_call.1} parent=19 // pred_fallthru
          _
        // Predicated region
        $region25: #{tpu_custom_call.1} parent=19 // pred_check
          %p193 = pneg %p102
        $region26: #{tpu_custom_call.1} parent=19 // pred_check_branch
          %195 = sbr.rel (%p193) target = $region28
        $region27: #{tpu_custom_call.1} parent=19 // pred_region
          %s196 = sand.u32 %s16, 1
          %s197 = scalar_lea.sflag [#allocation7], %s196
          %s198 = sand.u32 %s92, 1
          %s199 = scalar_lea.vmem [#allocation8], %s198
          %201 = vsyncadd %s197, 0
          %s202 = scalar_lea.hbm %s2, %s23
          %s204 = sshll.u32 %s202, 4
          %s205 = int_to_ptr.hbm [resolvable:$true] %s204
          %s206 = sshll.u32 %s199, 4
          %s207 = int_to_ptr.vmem [resolvable:$true] %s206
          %209 = dma.hbm_to_vmem [thread:$0]  %s205, 16, %s207, %s197
        $region28: #{tpu_custom_call.1} parent=19 // pred_fallthru
          _
      $region20: #{tpu_custom_call.1} parent=5 // pred_fallthru
        _
      %p210 = scmp.le.s32.totalorder 1, %s16
      %p211 = scmp.lt.s32.totalorder %s16, 3
      %p212 = pnand %p210, %p211
      %p213 = pneg %p212
      // Predicated region
      $region29: #{tpu_custom_call.1} parent=5 // pred_check
        _
      $region30: #{tpu_custom_call.1} parent=5 // pred_check_branch
        %215 = sbr.rel (%p212) target = $region32
      $region31: #{tpu_custom_call.1} parent=5 // pred_region
        %s216 = ssub.s32 %s16, 1
        // Predicated region
        $region33: #{tpu_custom_call.1} parent=31 // pred_check
          %p217 = pneg %p54
        $region34: #{tpu_custom_call.1} parent=31 // pred_check_branch
          %219 = sbr.rel (%p217) target = $region36
        $region35: #{tpu_custom_call.1} parent=31 // pred_region
          %221 = dma.done [#allocation4], 128
        $region36: #{tpu_custom_call.1} parent=31 // pred_fallthru
          _
        %s222 = sand.u32 %s21, 1
        %s223 = scalar_lea.sflag [#allocation7], %s222
        %s224 = sand.u32 %s69, 1
        %s225 = smul.addr %s224, 128
        %s226 = scalar_lea.vmem [#allocation6], %s225
        // Predicated region
        $region37: #{tpu_custom_call.1} parent=31 // pred_check
          %p227 = pneg %p82
        $region38: #{tpu_custom_call.1} parent=31 // pred_check_branch
          %229 = sbr.rel (%p227) target = $region40
        $region39: #{tpu_custom_call.1} parent=31 // pred_region
          %231 = dma.done %s223, 2048
        $region40: #{tpu_custom_call.1} parent=31 // pred_fallthru
          _
        %s232 = sand.u32 %s21, 1
        %s233 = scalar_lea.sflag [#allocation7], %s232
        %s234 = sand.u32 %s95, 1
        %s235 = scalar_lea.vmem [#allocation8], %s234
        // Predicated region
        $region41: #{tpu_custom_call.1} parent=31 // pred_check
          %p236 = pneg %p108
        $region42: #{tpu_custom_call.1} parent=31 // pred_check_branch
          %238 = sbr.rel (%p236) target = $region44
        $region43: #{tpu_custom_call.1} parent=31 // pred_region
          %240 = dma.done %s233, 16
        $region44: #{tpu_custom_call.1} parent=31 // pred_fallthru
          _
        %p241 = pneg %p54
        %p242 = pneg %p51
        %s243 = sand.u32 %s21, 1
        %s244 = scalar_lea.sflag [#allocation7], %s243
        %s245 = sand.u32 %s69, 1
        %s246 = smul.addr %s245, 128
        %s247 = scalar_lea.vmem [#allocation6], %s246
        %p248 = pneg %p82
        %p249 = pneg %p79
        %s250 = sand.u32 %s21, 1
        %s251 = scalar_lea.sflag [#allocation7], %s250
        %s252 = sand.u32 %s95, 1
        %s253 = scalar_lea.vmem [#allocation8], %s252
        %p254 = pneg %p108
        %p255 = pneg %p105
        %p256 = pneg %p134
        %p257 = pneg %p131
        %s258 = sand.u32 %s121, 1
        %s259 = scalar_lea.sflag [#allocation5], %s258
        %s260 = sand.u32 %s121, 1
        %s261 = smul.addr %s260, 4
        %s262 = scalar_lea.vmem [#allocation9], %s261
        %s263 = smul.u32 2, %s26
        %s264 = smul.u32 16, %s25
        %s265 = smul.u32 2, %s26
        %p266 = scmp.eq.s32.totalorder %s26, 0
        // Predicated region
        $region45: #{tpu_custom_call.1} parent=31 // pred_check
          %p267 = pneg %p266
        $region46: #{tpu_custom_call.1} parent=31 // pred_check_branch
          %269 = sbr.rel (%p267) target = $region48
        $region47: #{tpu_custom_call.1} parent=31 // pred_region
          %270 = vst [vmem:[#allocation2] sm:$0xff] 0.0
        $region48: #{tpu_custom_call.1} parent=31 // pred_fallthru
          _
        %v271 = vld [vmem:[#allocation2] sm:$0xff]
        %v272 = vld [vmem:[#allocation3] sm:$0xff]
        %v273 = vld [vmem:[%s226] sm:$0xff]
        %v274 = vld [vmem:[%s226 + $0x8] sm:$0xff]
        %v275 = vld [vmem:[%s226 + $0x10] sm:$0xff]
        %v276 = vld [vmem:[%s226 + $0x18] sm:$0xff]
        %v277 = vld [vmem:[%s226 + $0x20] sm:$0xff]
        %v278 = vld [vmem:[%s226 + $0x28] sm:$0xff]
        %v279 = vld [vmem:[%s226 + $0x30] sm:$0xff]
        %v280 = vld [vmem:[%s226 + $0x38] sm:$0xff]
        %v281 = vld [vmem:[%s226 + $0x40] sm:$0xff]
        %v282 = vld [vmem:[%s226 + $0x48] sm:$0xff]
        %v283 = vld [vmem:[%s226 + $0x50] sm:$0xff]
        %v284 = vld [vmem:[%s226 + $0x58] sm:$0xff]
        %v285 = vld [vmem:[%s226 + $0x60] sm:$0xff]
        %v286 = vld [vmem:[%s226 + $0x68] sm:$0xff]
        %v287 = vld [vmem:[%s226 + $0x70] sm:$0xff]
        %v288 = vld [vmem:[%s226 + $0x78] sm:$0xff]
        %v290 = vunpack.c.l.b16 %v272
        %v291 = vunpack.c.h.b16 %v272
        %v292 = vpack.c.b16 %v290, %v290
        %v293 = vpack.c.b16 %v291, %v291
        %v312 = vunpack.c.l.b16 %v273
        %v313 = vunpack.c.h.b16 %v273
        %v314 = vunpack.c.l.b16 %v274
        %v315 = vunpack.c.h.b16 %v274
        %v316 = vunpack.c.l.b16 %v275
        %v317 = vunpack.c.h.b16 %v275
        %v318 = vunpack.c.l.b16 %v276
        %v319 = vunpack.c.h.b16 %v276
        %v320 = vunpack.c.l.b16 %v277
        %v321 = vunpack.c.h.b16 %v277
        %v322 = vunpack.c.l.b16 %v278
        %v323 = vunpack.c.h.b16 %v278
        %v324 = vunpack.c.l.b16 %v279
        %v325 = vunpack.c.h.b16 %v279
        %v326 = vunpack.c.l.b16 %v280
        %v327 = vunpack.c.h.b16 %v280
        %v328 = vunpack.c.l.b16 %v281
        %v329 = vunpack.c.h.b16 %v281
        %v330 = vunpack.c.l.b16 %v282
        %v331 = vunpack.c.h.b16 %v282
        %v332 = vunpack.c.l.b16 %v283
        %v333 = vunpack.c.h.b16 %v283
        %v334 = vunpack.c.l.b16 %v284
        %v335 = vunpack.c.h.b16 %v284
        %v336 = vunpack.c.l.b16 %v285
        %v337 = vunpack.c.h.b16 %v285
        %v338 = vunpack.c.l.b16 %v286
        %v339 = vunpack.c.h.b16 %v286
        %v340 = vunpack.c.l.b16 %v287
        %v341 = vunpack.c.h.b16 %v287
        %v342 = vunpack.c.l.b16 %v288
        %v343 = vunpack.c.h.b16 %v288
        %v344 = vpack.c.b16 %v314, %v312
        %v345 = vpack.c.b16 %v315, %v313
        %v346 = vpack.c.b16 %v318, %v316
        %v347 = vpack.c.b16 %v319, %v317
        %v348 = vpack.c.b16 %v322, %v320
        %v349 = vpack.c.b16 %v323, %v321
        %v350 = vpack.c.b16 %v326, %v324
        %v351 = vpack.c.b16 %v327, %v325
        %v352 = vpack.c.b16 %v330, %v328
        %v353 = vpack.c.b16 %v331, %v329
        %v354 = vpack.c.b16 %v334, %v332
        %v355 = vpack.c.b16 %v335, %v333
        %v356 = vpack.c.b16 %v338, %v336
        %v357 = vpack.c.b16 %v339, %v337
        %v358 = vpack.c.b16 %v342, %v340
        %v359 = vpack.c.b16 %v343, %v341
        %376 = vmatpush.bf16.xpose.msra.mxu0 %v358
        %377 = vmatpush.bf16.xpose.msra.mxu0 %v356
        %378 = vmatpush.bf16.xpose.msra.mxu0 %v354
        %379 = vmatpush.bf16.xpose.msra.mxu0 %v352
        %380 = vmatpush.bf16.xpose.msra.mxu0 %v350
        %381 = vmatpush.bf16.xpose.msra.mxu0 %v348
        %382 = vmatpush.bf16.xpose.msra.mxu0 %v346
        %383 = vmatpush.bf16.xpose.msra.mxu0 %v344
        %384 = vmatmul.bf16.gmra.mxu0 %v292
        %v385 = vpop.f32.mrf.mxu0
        %v386 = vadd.f32 0.0, %v385
        %v387 = vpop.f32.mrf.mxu0
        %388 = vdwg.mxu0
        %389 = vmatpush.bf16.xpose.msra.mxu0 %v359
        %390 = vmatpush.bf16.xpose.msra.mxu0 %v357
        %391 = vmatpush.bf16.xpose.msra.mxu0 %v355
        %392 = vmatpush.bf16.xpose.msra.mxu0 %v353
        %393 = vmatpush.bf16.xpose.msra.mxu0 %v351
        %394 = vmatpush.bf16.xpose.msra.mxu0 %v349
        %395 = vmatpush.bf16.xpose.msra.mxu0 %v347
        %396 = vmatpush.bf16.xpose.msra.mxu0 %v345
        %397 = vmatmul.bf16.gmra.mxu0 %v293
        %v398 = vpop.f32.mrf.mxu0
        %v399 = vadd.f32 %v386, %v398
        %v400 = vpop.f32.mrf.mxu0
        %401 = vdwg.mxu0
        %v402 = vadd.f32 %v271, %v399
        %403 = vst [vmem:[#allocation2] sm:$0xff] %v402
        // Predicated region
        $region49: #{tpu_custom_call.1} parent=31 // pred_check
          %p404 = pneg %p266
        $region50: #{tpu_custom_call.1} parent=31 // pred_check_branch
          %406 = sbr.rel (%p404) target = $region52
        $region51: #{tpu_custom_call.1} parent=31 // pred_region
          %v407 = vld [vmem:[#allocation2] sm:$0xff]
          %v408 = vld [vmem:[%s235] sm:$0x1]
          %v409 = vunpack.c.l.bf16 %v408
          %v410 = vperm.slane %v409, 0
          %v411 = vadd.f32 %v407, %v410
          %v412 = vpack.c.bf16 %v411, %v411
          %413 = vst [vmem:[%s262] sm:$0xf] %v412
        $region52: #{tpu_custom_call.1} parent=31 // pred_fallthru
          _
        %s414 = sand.u32 %s121, 1
        %s415 = scalar_lea.sflag [#allocation5], %s414
        %s416 = sand.u32 %s121, 1
        %s417 = smul.addr %s416, 4
        %s418 = scalar_lea.vmem [#allocation9], %s417
        // Predicated region
        $region53: #{tpu_custom_call.1} parent=31 // pred_check
          %p419 = pneg %p131
        $region54: #{tpu_custom_call.1} parent=31 // pred_check_branch
          %421 = sbr.rel (%p419) target = $region56
        $region55: #{tpu_custom_call.1} parent=31 // pred_region
          %423 = vsyncadd %s415, 0
          %s424 = smul.addr %s25, 4
          %s425 = scalar_lea.hbm %s3, %s424
          %s427 = sshll.u32 %s418, 4
          %s428 = int_to_ptr.vmem [resolvable:$true] %s427
          %s429 = sshll.u32 %s425, 4
          %s430 = int_to_ptr.hbm [resolvable:$true] %s429
          %432 = dma.vmem_to_hbm [thread:$0]  %s428, 64, %s430, %s415
        $region56: #{tpu_custom_call.1} parent=31 // pred_fallthru
          _
      $region32: #{tpu_custom_call.1} parent=5 // pred_fallthru
        _
      %p433 = scmp.le.s32.totalorder 2, %s16
      // Predicated region
      $region57: #{tpu_custom_call.1} parent=5 // pred_check
        %p434 = pneg %p433
      $region58: #{tpu_custom_call.1} parent=5 // pred_check_branch
        %436 = sbr.rel (%p434) target = $region60
      $region59: #{tpu_custom_call.1} parent=5 // pred_region
        %s437 = ssub.s32 %s16, 2
        // Predicated region
        $region61: #{tpu_custom_call.1} parent=59 // pred_check
          %p438 = pneg %p137
        $region62: #{tpu_custom_call.1} parent=59 // pred_check_branch
          %440 = sbr.rel (%p438) target = $region64
        $region63: #{tpu_custom_call.1} parent=59 // pred_region
          %s441 = sand.u32 %s122, 1
          %s442 = scalar_lea.sflag [#allocation5], %s441
          %s443 = sand.u32 %s122, 1
          %s444 = smul.addr %s443, 4
          %s445 = scalar_lea.vmem [#allocation9], %s444
          %447 = dma.done %s442, 64
        $region64: #{tpu_custom_call.1} parent=59 // pred_fallthru
          _
      $region60: #{tpu_custom_call.1} parent=5 // pred_fallthru
        _
    $region6: #{tpu_custom_call.1} parent=1 // loop_footer
      %s20 = sadd.s32 1, %s16
    $region7: #{tpu_custom_call.1} parent=1 // loop_footer_branch
      %15 = sbr.rel target = $region3
    $region8: #{tpu_custom_call.1} parent=1 // loop_exit
      _
    %448 = vsyncpa [#allocation4], 1
    %s449 = scalar_lea.sflag [#allocation4], 1
    %450 = vsyncpa %s449, 1
    %451 = vsyncpa [#allocation7], 1
    %s452 = scalar_lea.sflag [#allocation7], 1
    %453 = vsyncpa %s452, 1
    %454 = vsyncpa [#allocation5], 1
    %s455 = scalar_lea.sflag [#allocation5], 1
    %456 = vsyncpa %s455, 1

</llo_original>
